<compile_context>
chip_gen: v7x
topology: tpu7x:2x2x1
jax: 0.10.0
libtpu: 0.0.40
codegen_flags: <defaults>
</compile_context>

<pallas_src>
import functools

import jax
import jax.numpy as jnp
from jax.experimental import pallas as pl
from jax.experimental.pallas import tpu as pltpu

EPS = 1e-5


# --------------------------------------------------------------------------- #
# Kernels
# --------------------------------------------------------------------------- #
def _attention_kernel(x_ref, sse_w_ref, sse_b_ref, w1t_ref, b1_ref, w2t_ref,
                      b2_ref, o_ref, *, inv_hw):
    """Fully fused path: block = (NB, C, HW) with full C and HW extents."""
    xn = x_ref[...]                                   # native dtype (NB, C, HW)

    # ---- SSE: 1x1 conv (C -> 1) + folded BN + sigmoid -> spatial gate.
    # VPU broadcast-mul + sublane (XLU) reduce; keeps the MXU out of a
    # degenerate M=1 matvec.  (If a v7x bundle dump ever shows VALU/XLU
    # saturation, this C-contraction can be moved onto the idle MXU.)
    s_pre = jnp.sum(sse_w_ref[...][None, :, :] * xn.astype(jnp.float32),
                    axis=1, keepdims=True)            # (NB, 1, HW)
    s_map = jax.nn.sigmoid(s_pre + sse_b_ref[...])    # (NB, 1, HW)

    # ---- CSE: global avg pool -> FC -> ReLU -> FC -> sigmoid -> channel gate.
    pooled = jnp.sum(xn.astype(jnp.float32), axis=2) * inv_hw        # (NB, C)
    h = jnp.dot(pooled, w1t_ref[...],
                preferred_element_type=jnp.float32) + b1_ref[...]
    h = jnp.maximum(h, 0.0)                                          # (NB, Ch)
    c = jnp.dot(h, w2t_ref[...],
                preferred_element_type=jnp.float32) + b2_ref[...]
    c_gate = jax.nn.sigmoid(c)[:, :, None]                           # (NB, C, 1)

    # ---- fused combine: sse(x)*x + cse(x)*x == (sse + cse) * x
    o_ref[...] = ((s_map + c_gate) * xn.astype(jnp.float32)).astype(o_ref.dtype)


def _combine_kernel(x_ref, sse_w_ref, sse_b_ref, c_gate_ref, o_ref):
    """Fallback path (HW-split): per-pixel SSE + combine; c_gate precomputed."""
    x = x_ref[...].astype(jnp.float32)                               # (1, C, hwt)
    s_pre = jnp.sum(sse_w_ref[...][None, :, :] * x, axis=1, keepdims=True)
    s_map = jax.nn.sigmoid(s_pre + sse_b_ref[...])                   # (1, 1, hwt)
    o_ref[...] = ((s_map + c_gate_ref[...]) * x).astype(o_ref.dtype)


# --------------------------------------------------------------------------- #
# Host-side wrapper
# --------------------------------------------------------------------------- #
def _vmem_limit_bytes(vmem_cap, native_block_bytes, f32_block_bytes):
    # double-buffered input + output blocks + ~3 full-block f32 temporaries
    # + params / headroom.
    est = 4 * native_block_bytes + 3 * f32_block_bytes + (2 << 20)
    return int(min(vmem_cap - (4 << 20), max(32 << 20, est)))


def _forward_batched(x, sse_w, sse_b, w1t, b1, w2t, b2, *, vmem_cap, budget):
    N, C, HW = x.shape
    Ch = w1t.shape[1]
    dtype = x.dtype
    itemsize = jnp.dtype(dtype).itemsize
    per_sample = C * HW * itemsize

    # Batch NB samples per grid step, cdiv grid (no exact-divisor requirement),
    # and keep >= 2 grid steps so v7x megacore can shard the parallel N axis.
    NB = max(1, min(N, budget // per_sample))
    if N >= 2:
        NB = min(NB, -(-N // 2))
    grid_n = -(-N // NB)

    block_bytes = NB * per_sample
    f32_block = NB * C * HW * 4

    cost = pl.CostEstimate(
        flops=5 * N * C * HW + 4 * N * C * Ch,
        transcendentals=N * HW + N * C,
        bytes_accessed=2 * N * C * HW * itemsize,
    )
    kernel = functools.partial(_attention_kernel, inv_hw=1.0 / HW)

    return pl.pallas_call(
        kernel,
        out_shape=jax.ShapeDtypeStruct((N, C, HW), dtype),
        grid_spec=pltpu.PrefetchScalarGridSpec(
            num_scalar_prefetch=0,
            grid=(grid_n,),
            in_specs=[
                pl.BlockSpec((NB, C, HW), lambda b: (b, 0, 0)),  # x
                pl.BlockSpec((C, 1),  lambda b: (0, 0)),         # sse weight (folded)
                pl.BlockSpec((1, 1),  lambda b: (0, 0)),         # sse bias   (folded)
                pl.BlockSpec((C, Ch), lambda b: (0, 0)),         # cse w1^T   (folded)
                pl.BlockSpec((1, Ch), lambda b: (0, 0)),         # cse b1     (folded)
                pl.BlockSpec((Ch, C), lambda b: (0, 0)),         # cse w2^T   (folded)
                pl.BlockSpec((1, C),  lambda b: (0, 0)),         # cse b2     (folded)
            ],
            out_specs=pl.BlockSpec((NB, C, HW), lambda b: (b, 0, 0)),
        ),
        compiler_params=pltpu.CompilerParams(
            dimension_semantics=("parallel",),
            vmem_limit_bytes=_vmem_limit_bytes(vmem_cap, block_bytes, f32_block),
        ),
        cost_estimate=cost,
    )(x, sse_w, sse_b, w1t, b1, w2t, b2)


def _forward_hw_split(x, sse_w, sse_b, w1t, b1, w2t, b2, *, vmem_cap, budget):
    """Fallback when a single sample's (C, HW) slab exceeds the block budget."""
    N, C, HW = x.shape
    dtype = x.dtype
    itemsize = jnp.dtype(dtype).itemsize

    # CSE pre-pass (global avg pool + two tiny FCs) outside the main kernel.
    # TODO(synk): the pooled pre-pass is one extra HBM read of x done by XLA's
    # reduce; a Pallas accumulator kernel would have identical traffic.
    pooled = jnp.mean(x.astype(jnp.float32), axis=2)                  # (N, C)
    h = jnp.maximum(pooled @ w1t + b1, 0.0)                           # (N, Ch)
    c_gate = jax.nn.sigmoid(h @ w2t + b2)[:, :, None]                 # (N, C, 1)
    c_gate = c_gate.astype(jnp.float32)

    hw_tile = (budget // (C * itemsize)) // 128 * 128
    hw_tile = max(128, hw_tile)
    if hw_tile >= HW:
        hw_tile = HW
    grid_hw = -(-HW // hw_tile)

    block_bytes = C * hw_tile * itemsize
    f32_block = C * hw_tile * 4

    cost = pl.CostEstimate(
        flops=5 * N * C * HW,
        transcendentals=N * HW,
        bytes_accessed=2 * N * C * HW * itemsize,
    )

    return pl.pallas_call(
        _combine_kernel,
        out_shape=jax.ShapeDtypeStruct((N, C, HW), dtype),
        grid_spec=pltpu.PrefetchScalarGridSpec(
            num_scalar_prefetch=0,
            grid=(N, grid_hw),
            in_specs=[
                pl.BlockSpec((1, C, hw_tile), lambda n, h: (n, 0, h)),  # x
                pl.BlockSpec((C, 1),   lambda n, h: (0, 0)),            # sse weight
                pl.BlockSpec((1, 1),   lambda n, h: (0, 0)),            # sse bias
                pl.BlockSpec((1, C, 1), lambda n, h: (n, 0, 0)),        # channel gate
            ],
            out_specs=pl.BlockSpec((1, C, hw_tile), lambda n, h: (n, 0, h)),
        ),
        compiler_params=pltpu.CompilerParams(
            dimension_semantics=("parallel", "parallel"),
            vmem_limit_bytes=_vmem_limit_bytes(vmem_cap, block_bytes, f32_block),
        ),
        cost_estimate=cost,
    )(x, sse_w, sse_b, c_gate)


def attention_forward(x_nchw, sse_w, sse_b, w1t, b1, w2t, b2,
                      *, block_budget_bytes=None):
    """x_nchw: (N,C,H,W); sse_w:(C,1) sse_b:(1,1) w1t:(C,Ch) b1:(1,Ch) w2t:(Ch,C) b2:(1,C)."""
    N, C, H, W = x_nchw.shape
    HW = H * W
    dtype = x_nchw.dtype
    itemsize = jnp.dtype(dtype).itemsize

    # Generation-aware block budget (v5e/v6e: 128 MiB VMEM, v7x: 64 MiB).
    try:
        vmem_cap = int(pltpu.get_tpu_info().vmem_capacity_bytes)
    except Exception:
        vmem_cap = 64 << 20          # conservative (v7x per-TC VMEM)
    if block_budget_bytes is None:
        block_budget_bytes = min(8 << 20, vmem_cap // 10)

    # No spatial padding: last two block dims equal the full array dims, so
    # Mosaic masks the ragged lane tail inside the kernel.
    x = x_nchw.reshape(N, C, HW)
    per_sample = C * HW * itemsize

    if per_sample <= block_budget_bytes:
        out = _forward_batched(x, sse_w, sse_b, w1t, b1, w2t, b2,
                               vmem_cap=vmem_cap, budget=block_budget_bytes)
    else:
        out = _forward_hw_split(x, sse_w, sse_b, w1t, b1, w2t, b2,
                                vmem_cap=vmem_cap, budget=block_budget_bytes)
    return out.reshape(N, C, H, W)


# --------------------------------------------------------------------------- #
# Host-side parameter folding & pure-JAX reference
# --------------------------------------------------------------------------- #
def fold_conv_bn(w, b, gamma, beta, mean, var):
    """Fold 1x1-conv bias + inference BatchNorm into weight/bias: y = W'x + b'."""
    s = gamma / jnp.sqrt(var + EPS)
    return w * s[:, None], b * s + (beta - mean * s)


def attention_ref(x, p):
    """Pure-JAX reference with unfolded conv + BN(inference) math (NCHW)."""
    # SSE
    s = jnp.einsum('nchw,oc->nohw', x, p['sse_w']) + p['sse_cb'][None, :, None, None]
    s = (s - p['sse_m']) / jnp.sqrt(p['sse_v'] + EPS) * p['sse_g'] + p['sse_be']
    s = jax.nn.sigmoid(s)
    # CSE
    z = x.mean(axis=(2, 3))                                         # (N, C)
    h = z @ p['w1'].T + p['b1']
    h = (h - p['m1']) / jnp.sqrt(p['v1'] + EPS) * p['g1'] + p['be1']
    h = jnp.maximum(h, 0.0)
    c = h @ p['w2'].T + p['b2']
    c = (c - p['m2']) / jnp.sqrt(p['v2'] + EPS) * p['g2'] + p['be2']
    c = jax.nn.sigmoid(c)[:, :, None, None]
    return s * x + c * x


def _make_params(C, Ch, key):
    ks = jax.random.split(key, 18)
    return dict(
        # SSE: Conv2d(C, 1, 1) + BatchNorm2d(1)
        sse_w=jax.random.normal(ks[1], (1, C), jnp.float32) * 0.3,
        sse_cb=jax.random.normal(ks[2], (1,), jnp.float32) * 0.1,
        sse_g=1.0 + 0.1 * jax.random.normal(ks[3], (1,), jnp.float32),
        sse_be=0.1 * jax.random.normal(ks[4], (1,), jnp.float32),
        sse_m=0.05 * jax.random.normal(ks[5], (1,), jnp.float32),
        sse_v=1.0 + 0.1 * jax.random.uniform(ks[6], (1,), jnp.float32),
        # CSE: Conv2d(C, C//2, 1) + BN(C//2)  ->  Conv2d(C//2, C, 1) + BN(C)
        w1=jax.random.normal(ks[7], (Ch, C), jnp.float32) * 0.3,
        b1=jax.random.normal(ks[8], (Ch,), jnp.float32) * 0.1,
        g1=1.0 + 0.1 * jax.random.normal(ks[9], (Ch,), jnp.float32),
        be1=0.1 * jax.random.normal(ks[10], (Ch,), jnp.float32),
        m1=0.05 * jax.random.normal(ks[11], (Ch,), jnp.float32),
        v1=1.0 + 0.1 * jax.random.uniform(ks[12], (Ch,), jnp.float32),
        w2=jax.random.normal(ks[13], (C, Ch), jnp.float32) * 0.3,
        b2=jax.random.normal(ks[14], (C,), jnp.float32) * 0.1,
        g2=1.0 + 0.1 * jax.random.normal(ks[15], (C,), jnp.float32),
        be2=0.1 * jax.random.normal(ks[16], (C,), jnp.float32),
        m2=0.05 * jax.random.normal(ks[17], (C,), jnp.float32),
        v2=1.0 + 0.1 * jax.random.uniform(ks[0], (C,), jnp.float32),
    )


def _run_case(N, C, H, W, key, block_budget_bytes=None):
    Ch = C // 2
    kx, kp = jax.random.split(key)
    x = jax.random.normal(kx, (N, C, H, W), jnp.float32)
    p = _make_params(C, Ch, kp)

    # Fold conv-bias + BN (inference) into affine weight/bias for the kernel.
    sse_wf, sse_bf = fold_conv_bn(p['sse_w'], p['sse_cb'], p['sse_g'], p['sse_be'],
                                  p['sse_m'], p['sse_v'])
    w1f, b1f = fold_conv_bn(p['w1'], p['b1'], p['g1'], p['be1'], p['m1'], p['v1'])
    w2f, b2f = fold_conv_bn(p['w2'], p['b2'], p['g2'], p['be2'], p['m2'], p['v2'])

    out = attention_forward(
        x,
        sse_wf.reshape(C, 1), sse_bf.reshape(1, 1),
        w1f.T, b1f.reshape(1, Ch),
        w2f.T, b2f.reshape(1, C),
        block_budget_bytes=block_budget_bytes,
    )
    out = jax.block_until_ready(out)

    ref = attention_ref(x, p)
    assert out.shape == x.shape
    if not jnp.allclose(out, ref, atol=1e-4, rtol=1e-4):
        raise AssertionError(
            f"kernel/reference mismatch ({N},{C},{H},{W}), "
            f"max abs err {jnp.max(jnp.abs(out - ref)):.3e}")


if __name__ == "__main__":
    key = jax.random.PRNGKey(0)
    k1, k2, k3, k4, k5 = jax.random.split(key, 5)
    # Lane-aligned spatial (HW multiple of 128), fused batched path.
    _run_case(2, 8, 16, 16, k1)
    # Ragged HW (14*14=196): no host-side pad/slice, Mosaic masks the tail.
    _run_case(2, 8, 14, 14, k2)
    # Odd N: cdiv grid with a masked partial trailing N block.
    _run_case(3, 8, 10, 10, k3)
    # Tiny block budget forces the HW-split fallback (large-feature-map path).
    _run_case(2, 8, 16, 16, k4, block_budget_bytes=4096)
    # Fallback path with a ragged trailing HW block.
    _run_case(2, 8, 14, 14, k5, block_budget_bytes=2048)
    print("KERNEL_OK")
</pallas_src>

<mosaic_0001>
module attributes {stable_mosaic.version = 11 : i64} {
  func.func @_attention_kernel(%arg0: i32, %arg1: memref<1x8x256xf32, #tpu.memory_space<vmem>>, %arg2: memref<8x1xf32, #tpu.memory_space<vmem>>, %arg3: memref<1x1xf32, #tpu.memory_space<vmem>>, %arg4: memref<8x4xf32, #tpu.memory_space<vmem>>, %arg5: memref<1x4xf32, #tpu.memory_space<vmem>>, %arg6: memref<4x8xf32, #tpu.memory_space<vmem>>, %arg7: memref<1x8xf32, #tpu.memory_space<vmem>>, %arg8: memref<1x8x256xf32, #tpu.memory_space<vmem>>) attributes {dimension_semantics = [#tpu.dimension_semantics<parallel>], iteration_bounds = array<i64: 2>, scalar_prefetch = 0 : i64, scratch_operands = 0 : i64, tpu.core_type = #tpu.core_type<tc>, window_params = [{transform_indices = @transform_0, window_bounds = array<i64: 1, 8, 256>}, {pipeline_mode = #tpu.pipeline_mode<synchronous>, transform_indices = @transform_1, window_bounds = array<i64: 8, 1>}, {pipeline_mode = #tpu.pipeline_mode<synchronous>, transform_indices = @transform_2, window_bounds = array<i64: 1, 1>}, {pipeline_mode = #tpu.pipeline_mode<synchronous>, transform_indices = @transform_3, window_bounds = array<i64: 8, 4>}, {pipeline_mode = #tpu.pipeline_mode<synchronous>, transform_indices = @transform_4, window_bounds = array<i64: 1, 4>}, {pipeline_mode = #tpu.pipeline_mode<synchronous>, transform_indices = @transform_5, window_bounds = array<i64: 4, 8>}, {pipeline_mode = #tpu.pipeline_mode<synchronous>, transform_indices = @transform_6, window_bounds = array<i64: 1, 8>}, {transform_indices = @transform_7, window_bounds = array<i64: 1, 8, 256>}]} {
    %c0 = arith.constant 0 : index
    %c0_0 = arith.constant 0 : index
    %c0_1 = arith.constant 0 : index
    %0 = vector.load %arg1[%c0, %c0_0, %c0_1] : memref<1x8x256xf32, #tpu.memory_space<vmem>>, vector<1x8x256xf32>
    %c0_2 = arith.constant 0 : index
    %c0_3 = arith.constant 0 : index
    %1 = vector.load %arg2[%c0_2, %c0_3] : memref<8x1xf32, #tpu.memory_space<vmem>>, vector<8x1xf32>
    %2 = vector.shape_cast %1 : vector<8x1xf32> to vector<1x8x1xf32>
    %3 = vector.broadcast %2 : vector<1x8x1xf32> to vector<1x8x256xf32>
    %4 = arith.mulf %3, %0 : vector<1x8x256xf32>
    %cst = arith.constant dense<0.000000e+00> : vector<1x256xf32>
    %5 = vector.multi_reduction <add>, %4, %cst [1] : vector<1x8x256xf32> to vector<1x256xf32>
    %6 = vector.shape_cast %5 : vector<1x256xf32> to vector<1x1x256xf32>
    %c0_4 = arith.constant 0 : index
    %c0_5 = arith.constant 0 : index
    %7 = vector.load %arg3[%c0_4, %c0_5] : memref<1x1xf32, #tpu.memory_space<vmem>>, vector<1x1xf32>
    %8 = vector.shape_cast %7 : vector<1x1xf32> to vector<1x1x1xf32>
    %9 = vector.broadcast %8 : vector<1x1x1xf32> to vector<1x1x256xf32>
    %10 = arith.addf %6, %9 : vector<1x1x256xf32>
    %11 = arith.negf %10 : vector<1x1x256xf32>
    %12 = math.exp %11 : vector<1x1x256xf32>
    %cst_6 = arith.constant 1.000000e+00 : f32
    %13 = vector.broadcast %cst_6 : f32 to vector<1x1x256xf32>
    %14 = arith.addf %13, %12 : vector<1x1x256xf32>
    %15 = arith.divf %13, %14 : vector<1x1x256xf32>
    %cst_7 = arith.constant dense<0.000000e+00> : vector<1x8xf32>
    %16 = vector.multi_reduction <add>, %0, %cst_7 [2] : vector<1x8x256xf32> to vector<1x8xf32>
    %cst_8 = arith.constant 3.906250e-03 : f32
    %17 = vector.broadcast %cst_8 : f32 to vector<1x8xf32>
    %18 = arith.mulf %16, %17 : vector<1x8xf32>
    %c0_9 = arith.constant 0 : index
    %c0_10 = arith.constant 0 : index
    %19 = vector.load %arg4[%c0_9, %c0_10] : memref<8x4xf32, #tpu.memory_space<vmem>>, vector<8x4xf32>
    %cst_11 = arith.constant dense<0.000000e+00> : vector<1x4xf32>
    %20 = tpu.matmul %18, %19, %cst_11 {dimension_numbers = #tpu.dot_dimension_numbers<[1], [0], [0], [1], [0, 0, 1, 1], [], []>} : vector<1x8xf32>, vector<8x4xf32>, vector<1x4xf32> -> vector<1x4xf32>
    %c0_12 = arith.constant 0 : index
    %c0_13 = arith.constant 0 : index
    %21 = vector.load %arg5[%c0_12, %c0_13] : memref<1x4xf32, #tpu.memory_space<vmem>>, vector<1x4xf32>
    %22 = arith.addf %20, %21 : vector<1x4xf32>
    %cst_14 = arith.constant 0.000000e+00 : f32
    %23 = vector.broadcast %cst_14 : f32 to vector<1x4xf32>
    %24 = arith.maximumf %22, %23 : vector<1x4xf32>
    %c0_15 = arith.constant 0 : index
    %c0_16 = arith.constant 0 : index
    %25 = vector.load %arg6[%c0_15, %c0_16] : memref<4x8xf32, #tpu.memory_space<vmem>>, vector<4x8xf32>
    %cst_17 = arith.constant dense<0.000000e+00> : vector<1x8xf32>
    %26 = tpu.matmul %24, %25, %cst_17 {dimension_numbers = #tpu.dot_dimension_numbers<[1], [0], [0], [1], [0, 0, 1, 1], [], []>} : vector<1x4xf32>, vector<4x8xf32>, vector<1x8xf32> -> vector<1x8xf32>
    %c0_18 = arith.constant 0 : index
    %c0_19 = arith.constant 0 : index
    %27 = vector.load %arg7[%c0_18, %c0_19] : memref<1x8xf32, #tpu.memory_space<vmem>>, vector<1x8xf32>
    %28 = arith.addf %26, %27 : vector<1x8xf32>
    %29 = arith.negf %28 : vector<1x8xf32>
    %30 = math.exp %29 : vector<1x8xf32>
    %cst_20 = arith.constant 1.000000e+00 : f32
    %31 = vector.broadcast %cst_20 : f32 to vector<1x8xf32>
    %32 = arith.addf %31, %30 : vector<1x8xf32>
    %33 = arith.divf %31, %32 : vector<1x8xf32>
    %34 = vector.shape_cast %33 : vector<1x8xf32> to vector<1x8x1xf32>
    %35 = vector.broadcast %15 : vector<1x1x256xf32> to vector<1x8x256xf32>
    %36 = vector.broadcast %34 : vector<1x8x1xf32> to vector<1x8x256xf32>
    %37 = arith.addf %35, %36 : vector<1x8x256xf32>
    %38 = arith.mulf %37, %0 : vector<1x8x256xf32>
    %c0_21 = arith.constant 0 : index
    %c0_22 = arith.constant 0 : index
    %c0_23 = arith.constant 0 : index
    %39 = vector.load %arg8[%c0_21, %c0_22, %c0_23] : memref<1x8x256xf32, #tpu.memory_space<vmem>>, vector<1x8x256xf32>
    tpu.vector_store %arg8[%c0_21, %c0_22, %c0_23], %38 {strides = array<i32>} : memref<1x8x256xf32, #tpu.memory_space<vmem>>, vector<1x8x256xf32>,
    return
  }
  func.func @transform_0(%arg0: i32) -> (i32, i32, i32) {
    %c0_i32 = arith.constant 0 : i32
    %c0_i32_0 = arith.constant 0 : i32
    %c0_i32_1 = arith.constant 0 : i32
    return %arg0, %c0_i32, %c0_i32_0 : i32, i32, i32
  }
  func.func @transform_1(%arg0: i32) -> (i32, i32) {
    %c0_i32 = arith.constant 0 : i32
    %c0_i32_0 = arith.constant 0 : i32
    %c0_i32_1 = arith.constant 0 : i32
    return %c0_i32, %c0_i32_0 : i32, i32
  }
  func.func @transform_2(%arg0: i32) -> (i32, i32) {
    %c0_i32 = arith.constant 0 : i32
    %c0_i32_0 = arith.constant 0 : i32
    %c0_i32_1 = arith.constant 0 : i32
    return %c0_i32, %c0_i32_0 : i32, i32
  }
  func.func @transform_3(%arg0: i32) -> (i32, i32) {
    %c0_i32 = arith.constant 0 : i32
    %c0_i32_0 = arith.constant 0 : i32
    %c0_i32_1 = arith.constant 0 : i32
    return %c0_i32, %c0_i32_0 : i32, i32
  }
  func.func @transform_4(%arg0: i32) -> (i32, i32) {
    %c0_i32 = arith.constant 0 : i32
    %c0_i32_0 = arith.constant 0 : i32
    %c0_i32_1 = arith.constant 0 : i32
    return %c0_i32, %c0_i32_0 : i32, i32
  }
  func.func @transform_5(%arg0: i32) -> (i32, i32) {
    %c0_i32 = arith.constant 0 : i32
    %c0_i32_0 = arith.constant 0 : i32
    %c0_i32_1 = arith.constant 0 : i32
    return %c0_i32, %c0_i32_0 : i32, i32
  }
  func.func @transform_6(%arg0: i32) -> (i32, i32) {
    %c0_i32 = arith.constant 0 : i32
    %c0_i32_0 = arith.constant 0 : i32
    %c0_i32_1 = arith.constant 0 : i32
    return %c0_i32, %c0_i32_0 : i32, i32
  }
  func.func @transform_7(%arg0: i32) -> (i32, i32, i32) {
    %c0_i32 = arith.constant 0 : i32
    %c0_i32_0 = arith.constant 0 : i32
    %c0_i32_1 = arith.constant 0 : i32
    return %arg0, %c0_i32, %c0_i32_0 : i32, i32, i32
  }
}

</mosaic_0001>

<llo_original>
// kernel: tpu_custom_call.1
$region0: #{tpu_custom_call.1}
  #allocation0 [shape = 'u32[]', space=smem, size = 0x4, offset = 0x4, fixed_abs, tag = 'smem constant byte address 0x4 - core index']
  #allocation1 [shape = 'u32[144,128]{1,0:T(1,128)}', space=vmem, size = 0x12000, scoped, tag = 'internal scratch']
  #allocation2 [shape = 'f32[1,1]{1,0:T(1,128)S(1)}', space=vmem, size = 0x200, scoped, tag = 'scoped memory for tpu_custom_call.1']
  %s0 = inlined_call_operand.hbm [shape: f32[2,8,256], index: 0, kind: input, shape index: {}]
  %s1 = inlined_call_operand.vmem [shape: f32[8,1], index: 1, kind: input, shape index: {}]
  %s2 = inlined_call_operand.<no memory space> [shape: f32[1,1], index: 2, kind: input, shape index: {}]
  %s3 = inlined_call_operand.vmem [shape: f32[8,4], index: 3, kind: input, shape index: {}]
  %s4 = inlined_call_operand.vmem [shape: f32[1,4], index: 4, kind: input, shape index: {}]
  %s5 = inlined_call_operand.vmem [shape: f32[4,8], index: 5, kind: input, shape index: {}]
  %s6 = inlined_call_operand.vmem [shape: f32[1,8], index: 6, kind: input, shape index: {}]
  %s7 = inlined_call_operand.hbm [shape: f32[2,8,256], index: 7, kind: output, shape index: {}]
  %s8 = sld [smem:[#allocation0]]
  $region65: #{tpu_custom_call.1} parent=0
    _
  %s10 = ssub.s32 1, %s8
  %s11 = scalar_select 0, %s10, %s8
  %v12 = vstv %s2
  %13 = vst [vmem:[#allocation2] sm:$0x1] %v12
  $region1: #{tpu_custom_call.1} parent=0
    #allocation3 [shape = 'u8[16384]{0}', space=vmem, size = 0x4000, scoped, tag = 'input window, operand 0']
    #allocation4 [shape = 's32[2]{0}', space=sflag, size = 0x8, scoped, tag = 'scoped memory for tpu_custom_call.1']
    #allocation5 [shape = 's32[2]{0}', space=sflag, size = 0x8, scoped, tag = 'scoped memory for tpu_custom_call.1']
    #allocation6 [shape = 'u8[16384]{0}', space=vmem, size = 0x4000, scoped, tag = 'output window, operand 0']
    %14 = vsyncpa [#allocation4], 0
    %s15 = scalar_lea.sflag [#allocation4], 1
    %16 = vsyncpa %s15, 0
    %17 = vsyncpa [#allocation5], 0
    %s18 = scalar_lea.sflag [#allocation5], 1
    %19 = vsyncpa %s18, 0
    loop: start=0, step=1, limit=4
    $region2: #{tpu_custom_call.1} parent=1 // loop_pre_header
      _
    $region3: #{tpu_custom_call.1} parent=1 // loop_header
      %s21 = sphi 0, %s25
      %p22 = scmp.ge.s32.totalorder %s21, 4
      %s31 = sphi 0, %s33
      %s34 = sphi 0, %s31
      %s35 = sphi 0, %s34
      %s51 = sphi 0, %s35
      %s55 = sphi 0, %s55
      %s57 = sphi 0, %s55
      %s58 = sphi 0, %s57
      %s72 = sphi 0, %s58
      %s76 = sphi 0, %s76
      %s78 = sphi 0, %s76
      %s79 = sphi 0, %s78
      %s93 = sphi 0, %s79
      %s97 = sphi 0, %s97
      %s99 = sphi 0, %s97
      %s100 = sphi 0, %s99
      %s114 = sphi 0, %s100
      %s118 = sphi 0, %s118
      %s120 = sphi 0, %s118
      %s121 = sphi 0, %s120
      %s135 = sphi 0, %s121
      %s139 = sphi 0, %s139
      %s141 = sphi 0, %s139
      %s142 = sphi 0, %s141
      %s156 = sphi 0, %s142
      %s160 = sphi 0, %s160
      %s162 = sphi 0, %s160
      %s163 = sphi 0, %s162
      %s177 = sphi 0, %s163
      %s183 = sphi 0, %s185
      %s186 = sphi 0, %s183
      %s187 = sphi 0, %s186
      %s203 = sphi 0, %s187
    $region4: #{tpu_custom_call.1} parent=1 // loop_header_branch
      %24 = sbr.rel (%p22) target = $region8
    $region5: #{tpu_custom_call.1} parent=1 // loop_body
      %s26 = ssub.s32 %s21, 1
      %s27 = ssub.s32 %s21, 2
      %s28 = sadd.s32 %s21, 1
      %s29 = ssub.s32 %s21, %s28
      %p30 = scmp.eq.s32.totalorder %s29, 0
      %s32 = sadd.s32 %s31, 1
      %s33 = scalar_select %p30, %s31, %s32
      %p36 = pneg %p30
      %p37 = scmp.eq.s32.totalorder %s21, 1
      %p38 = por %p36, %p37
      %p39 = scmp.ne.s32.totalorder %s31, %s34
      %p40 = scmp.eq.s32.totalorder %s21, 0
      %p41 = por %p39, %p40
      %p42 = scmp.ne.s32.totalorder %s31, %s34
      %p43 = scmp.eq.s32.totalorder %s26, 1
      %p44 = por %p42, %p43
      %p45 = scmp.ne.s32.totalorder %s34, %s35
      %p46 = scmp.eq.s32.totalorder %s26, 0
      %p47 = por %p45, %p46
      %p48 = scmp.ne.s32.totalorder %s34, %s35
      %p49 = scmp.eq.s32.totalorder %s27, 1
      %p50 = por %p48, %p49
      %p52 = scmp.ne.s32.totalorder %s35, %s51
      %p53 = scmp.eq.s32.totalorder %s27, 0
      %p54 = por %p52, %p53
      %s56 = sadd.s32 %s55, 1
      %p59 = scmp.eq.s32.totalorder %s21, 1
      %p60 = scmp.ne.s32.totalorder %s55, %s57
      %p61 = scmp.eq.s32.totalorder %s21, 0
      %p62 = por %p60, %p61
      %p63 = scmp.ne.s32.totalorder %s55, %s57
      %p64 = scmp.eq.s32.totalorder %s26, 1
      %p65 = por %p63, %p64
      %p66 = scmp.ne.s32.totalorder %s57, %s58
      %p67 = scmp.eq.s32.totalorder %s26, 0
      %p68 = por %p66, %p67
      %p69 = scmp.ne.s32.totalorder %s57, %s58
      %p70 = scmp.eq.s32.totalorder %s27, 1
      %p71 = por %p69, %p70
      %p73 = scmp.ne.s32.totalorder %s58, %s72
      %p74 = scmp.eq.s32.totalorder %s27, 0
      %p75 = por %p73, %p74
      %s77 = sadd.s32 %s76, 1
      %p80 = scmp.eq.s32.totalorder %s21, 1
      %p81 = scmp.ne.s32.totalorder %s76, %s78
      %p82 = scmp.eq.s32.totalorder %s21, 0
      %p83 = por %p81, %p82
      %p84 = scmp.ne.s32.totalorder %s76, %s78
      %p85 = scmp.eq.s32.totalorder %s26, 1
      %p86 = por %p84, %p85
      %p87 = scmp.ne.s32.totalorder %s78, %s79
      %p88 = scmp.eq.s32.totalorder %s26, 0
      %p89 = por %p87, %p88
      %p90 = scmp.ne.s32.totalorder %s78, %s79
      %p91 = scmp.eq.s32.totalorder %s27, 1
      %p92 = por %p90, %p91
      %p94 = scmp.ne.s32.totalorder %s79, %s93
      %p95 = scmp.eq.s32.totalorder %s27, 0
      %p96 = por %p94, %p95
      %s98 = sadd.s32 %s97, 1
      %p101 = scmp.eq.s32.totalorder %s21, 1
      %p102 = scmp.ne.s32.totalorder %s97, %s99
      %p103 = scmp.eq.s32.totalorder %s21, 0
      %p104 = por %p102, %p103
      %p105 = scmp.ne.s32.totalorder %s97, %s99
      %p106 = scmp.eq.s32.totalorder %s26, 1
      %p107 = por %p105, %p106
      %p108 = scmp.ne.s32.totalorder %s99, %s100
      %p109 = scmp.eq.s32.totalorder %s26, 0
      %p110 = por %p108, %p109
      %p111 = scmp.ne.s32.totalorder %s99, %s100
      %p112 = scmp.eq.s32.totalorder %s27, 1
      %p113 = por %p111, %p112
      %p115 = scmp.ne.s32.totalorder %s100, %s114
      %p116 = scmp.eq.s32.totalorder %s27, 0
      %p117 = por %p115, %p116
      %s119 = sadd.s32 %s118, 1
      %p122 = scmp.eq.s32.totalorder %s21, 1
      %p123 = scmp.ne.s32.totalorder %s118, %s120
      %p124 = scmp.eq.s32.totalorder %s21, 0
      %p125 = por %p123, %p124
      %p126 = scmp.ne.s32.totalorder %s118, %s120
      %p127 = scmp.eq.s32.totalorder %s26, 1
      %p128 = por %p126, %p127
      %p129 = scmp.ne.s32.totalorder %s120, %s121
      %p130 = scmp.eq.s32.totalorder %s26, 0
      %p131 = por %p129, %p130
      %p132 = scmp.ne.s32.totalorder %s120, %s121
      %p133 = scmp.eq.s32.totalorder %s27, 1
      %p134 = por %p132, %p133
      %p136 = scmp.ne.s32.totalorder %s121, %s135
      %p137 = scmp.eq.s32.totalorder %s27, 0
      %p138 = por %p136, %p137
      %s140 = sadd.s32 %s139, 1
      %p143 = scmp.eq.s32.totalorder %s21, 1
      %p144 = scmp.ne.s32.totalorder %s139, %s141
      %p145 = scmp.eq.s32.totalorder %s21, 0
      %p146 = por %p144, %p145
      %p147 = scmp.ne.s32.totalorder %s139, %s141
      %p148 = scmp.eq.s32.totalorder %s26, 1
      %p149 = por %p147, %p148
      %p150 = scmp.ne.s32.totalorder %s141, %s142
      %p151 = scmp.eq.s32.totalorder %s26, 0
      %p152 = por %p150, %p151
      %p153 = scmp.ne.s32.totalorder %s141, %s142
      %p154 = scmp.eq.s32.totalorder %s27, 1
      %p155 = por %p153, %p154
      %p157 = scmp.ne.s32.totalorder %s142, %s156
      %p158 = scmp.eq.s32.totalorder %s27, 0
      %p159 = por %p157, %p158
      %s161 = sadd.s32 %s160, 1
      %p164 = scmp.eq.s32.totalorder %s21, 1
      %p165 = scmp.ne.s32.totalorder %s160, %s162
      %p166 = scmp.eq.s32.totalorder %s21, 0
      %p167 = por %p165, %p166
      %p168 = scmp.ne.s32.totalorder %s160, %s162
      %p169 = scmp.eq.s32.totalorder %s26, 1
      %p170 = por %p168, %p169
      %p171 = scmp.ne.s32.totalorder %s162, %s163
      %p172 = scmp.eq.s32.totalorder %s26, 0
      %p173 = por %p171, %p172
      %p174 = scmp.ne.s32.totalorder %s162, %s163
      %p175 = scmp.eq.s32.totalorder %s27, 1
      %p176 = por %p174, %p175
      %p178 = scmp.ne.s32.totalorder %s163, %s177
      %p179 = scmp.eq.s32.totalorder %s27, 0
      %p180 = por %p178, %p179
      %s181 = ssub.s32 %s21, %s28
      %p182 = scmp.eq.s32.totalorder %s181, 0
      %s184 = sadd.s32 %s183, 1
      %s185 = scalar_select %p182, %s183, %s184
      %p188 = pneg %p182
      %p189 = scmp.eq.s32.totalorder %s21, 1
      %p190 = por %p188, %p189
      %p191 = scmp.ne.s32.totalorder %s183, %s186
      %p192 = scmp.eq.s32.totalorder %s21, 0
      %p193 = por %p191, %p192
      %p194 = scmp.ne.s32.totalorder %s183, %s186
      %p195 = scmp.eq.s32.totalorder %s26, 1
      %p196 = por %p194, %p195
      %p197 = scmp.ne.s32.totalorder %s186, %s187
      %p198 = scmp.eq.s32.totalorder %s26, 0
      %p199 = por %p197, %p198
      %p200 = scmp.ne.s32.totalorder %s186, %s187
      %p201 = scmp.eq.s32.totalorder %s27, 1
      %p202 = por %p200, %p201
      %p204 = scmp.ne.s32.totalorder %s187, %s203
      %p205 = scmp.eq.s32.totalorder %s27, 0
      %p206 = por %p204, %p205
      %p207 = scmp.le.s32.totalorder 1, %s21
      %p208 = scmp.lt.s32.totalorder %s21, 3
      %p209 = pnand %p207, %p208
      %p210 = pneg %p209
      // Predicated region
      $region9: #{tpu_custom_call.1} parent=5 // pred_check
        _
      $region10: #{tpu_custom_call.1} parent=5 // pred_check_branch
        %212 = sbr.rel (%p209) target = $region12
      $region11: #{tpu_custom_call.1} parent=5 // pred_region
        %s213 = ssub.s32 %s21, 1
        // Predicated region
        $region13: #{tpu_custom_call.1} parent=11 // pred_check
          %p214 = pneg %p68
        $region14: #{tpu_custom_call.1} parent=11 // pred_check_branch
          %216 = sbr.rel (%p214) target = $region16
        $region15: #{tpu_custom_call.1} parent=11 // pred_region
          _
        $region16: #{tpu_custom_call.1} parent=11 // pred_fallthru
          _
        // Predicated region
        $region17: #{tpu_custom_call.1} parent=11 // pred_check
          %p217 = pneg %p89
        $region18: #{tpu_custom_call.1} parent=11 // pred_check_branch
          %219 = sbr.rel (%p217) target = $region20
        $region19: #{tpu_custom_call.1} parent=11 // pred_region
          _
        $region20: #{tpu_custom_call.1} parent=11 // pred_fallthru
          _
        // Predicated region
        $region21: #{tpu_custom_call.1} parent=11 // pred_check
          %p220 = pneg %p110
        $region22: #{tpu_custom_call.1} parent=11 // pred_check_branch
          %222 = sbr.rel (%p220) target = $region24
        $region23: #{tpu_custom_call.1} parent=11 // pred_region
          _
        $region24: #{tpu_custom_call.1} parent=11 // pred_fallthru
          _
        // Predicated region
        $region25: #{tpu_custom_call.1} parent=11 // pred_check
          %p223 = pneg %p131
        $region26: #{tpu_custom_call.1} parent=11 // pred_check_branch
          %225 = sbr.rel (%p223) target = $region28
        $region27: #{tpu_custom_call.1} parent=11 // pred_region
          _
        $region28: #{tpu_custom_call.1} parent=11 // pred_fallthru
          _
        // Predicated region
        $region29: #{tpu_custom_call.1} parent=11 // pred_check
          %p226 = pneg %p152
        $region30: #{tpu_custom_call.1} parent=11 // pred_check_branch
          %228 = sbr.rel (%p226) target = $region32
        $region31: #{tpu_custom_call.1} parent=11 // pred_region
          _
        $region32: #{tpu_custom_call.1} parent=11 // pred_fallthru
          _
        // Predicated region
        $region33: #{tpu_custom_call.1} parent=11 // pred_check
          %p229 = pneg %p173
        $region34: #{tpu_custom_call.1} parent=11 // pred_check_branch
          %231 = sbr.rel (%p229) target = $region36
        $region35: #{tpu_custom_call.1} parent=11 // pred_region
          _
        $region36: #{tpu_custom_call.1} parent=11 // pred_fallthru
          _
      $region12: #{tpu_custom_call.1} parent=5 // pred_fallthru
        _
      %p232 = scmp.lt.s32.totalorder %s21, 2
      // Predicated region
      $region37: #{tpu_custom_call.1} parent=5 // pred_check
        %p233 = pneg %p232
      $region38: #{tpu_custom_call.1} parent=5 // pred_check_branch
        %235 = sbr.rel (%p233) target = $region40
      $region39: #{tpu_custom_call.1} parent=5 // pred_region
        // Predicated region
        $region41: #{tpu_custom_call.1} parent=39 // pred_check
          %p236 = pneg %p41
        $region42: #{tpu_custom_call.1} parent=39 // pred_check_branch
          %238 = sbr.rel (%p236) target = $region44
        $region43: #{tpu_custom_call.1} parent=39 // pred_region
          %s239 = sand.u32 %s31, 1
          %s240 = scalar_lea.sflag [#allocation4], %s239
          %s241 = sand.u32 %s31, 1
          %s242 = smul.addr %s241, 16
          %s243 = scalar_lea.vmem [#allocation3], %s242
          %s245 = ssub.s32 256, 256
          %246 = vsyncadd %s240, %s245
          %s247 = smul.addr %s21, 2
          %s248 = smul.addr %s247, 128
          %s249 = scalar_lea.hbm %s0, %s248
          %s251 = sshll.u32 %s243, 4
          %s252 = int_to_ptr.vmem [resolvable:$true] %s251
          %254 = dma.hbm_to_vmem [thread:$0]  %s249, 256, %s252, %s240
        $region44: #{tpu_custom_call.1} parent=39 // pred_fallthru
          _
      $region40: #{tpu_custom_call.1} parent=5 // pred_fallthru
        _
      %p255 = scmp.le.s32.totalorder 1, %s21
      %p256 = scmp.lt.s32.totalorder %s21, 3
      %p257 = pnand %p255, %p256
      %p258 = pneg %p257
      // Predicated region
      $region45: #{tpu_custom_call.1} parent=5 // pred_check
        _
      $region46: #{tpu_custom_call.1} parent=5 // pred_check_branch
        %260 = sbr.rel (%p257) target = $region48
      $region47: #{tpu_custom_call.1} parent=5 // pred_region
        %s261 = ssub.s32 %s21, 1
        %s262 = sand.u32 %s34, 1
        %s263 = scalar_lea.sflag [#allocation4], %s262
        %s264 = sand.u32 %s34, 1
        %s265 = smul.addr %s264, 16
        %s266 = scalar_lea.vmem [#allocation3], %s265
        // Predicated region
        $region49: #{tpu_custom_call.1} parent=47 // pred_check
          %p267 = pneg %p47
        $region50: #{tpu_custom_call.1} parent=47 // pred_check_branch
          %269 = sbr.rel (%p267) target = $region52
        $region51: #{tpu_custom_call.1} parent=47 // pred_region
          %270 = dma.done %s263, 256
        $region52: #{tpu_custom_call.1} parent=47 // pred_fallthru
          _
        %s271 = sand.u32 %s34, 1
        %s272 = scalar_lea.sflag [#allocation4], %s271
        %s273 = sand.u32 %s34, 1
        %s274 = smul.addr %s273, 16
        %s275 = scalar_lea.vmem [#allocation3], %s274
        %p276 = pneg %p47
        %p277 = pneg %p44
        %p278 = pneg %p68
        %p279 = pneg %p65
        %p280 = pneg %p89
        %p281 = pneg %p86
        %p282 = pneg %p110
        %p283 = pneg %p107
        %p284 = pneg %p131
        %p285 = pneg %p128
        %p286 = pneg %p152
        %p287 = pneg %p149
        %p288 = pneg %p173
        %p289 = pneg %p170
        %p290 = pneg %p199
        %p291 = pneg %p196
        %s292 = sand.u32 %s186, 1
        %s293 = scalar_lea.sflag [#allocation5], %s292
        %s294 = sand.u32 %s186, 1
        %s295 = smul.addr %s294, 16
        %s296 = scalar_lea.vmem [#allocation6], %s295
        %v297 = vld [vmem:[%s266] sm:$0xff]
        %v298 = vld [vmem:[%s266 + $0x8] sm:$0xff]
        %v299 = vld [vmem:[%s1] sm:$0xff]
        %301 = vset.pattern.permute.xlu0 0
        %302 = vperm.xlu0 %301, %v299
        %v303 = vpop.permute.xlu0 %302
        %v305 = vmul.f32 %v303, %v297
        %v306 = vmul.f32 %v303, %v298
        %v307 = vrot.slane %v305, 4
        %v308 = vadd.f32 %v305, %v307
        %v309 = vrot.slane %v308, 2
        %v310 = vadd.f32 %v308, %v309
        %v311 = vrot.slane %v310, 1
        %v312 = vadd.f32 %v310, %v311
        %v313 = vrot.slane %v306, 4
        %v314 = vadd.f32 %v306, %v313
        %v315 = vrot.slane %v314, 2
        %v316 = vadd.f32 %v314, %v315
        %v317 = vrot.slane %v316, 1
        %v318 = vadd.f32 %v316, %v317
        %v319 = vld [vmem:[#allocation2] sm:$0x1]
        %321 = vset.pattern.permute.xlu0 0
        %322 = vperm.xlu0 %321, %v319
        %v323 = vpop.permute.xlu0 %322
        %v325 = vlaneseq
        %v326 = vshrl.u32 %v325, 7
        %v327 = vsub.s32 0, %v326
        %v328 = vrot.slane %v323, %v327
        %v329 = vadd.f32 %v312, %v328
        %v330 = vadd.f32 %v318, %v328
        %v331 = vxor.u32 %v329, 2147483648
        %v332 = vxor.u32 %v330, 2147483648
        %v333 = vmul.f32 %v331, 1.442695
        %v334 = vpow.pop %v333
        %v335 = vmul.f32 %v332, 1.442695
        %v336 = vpow.pop %v335
        %v337 = vadd.f32 %v334, 1.0
        %v338 = vadd.f32 %v336, 1.0
        %v339 = vrcp.pop %v337
        %v340 = vmul.f32 1.0, %v339
        %v341 = vrcp.pop %v338
        %v342 = vmul.f32 1.0, %v341
        %v343 = vadd.f32 %v297, %v298
        %344 = vadd.xlane.f32.xlu0 %v343
        %v345 = vpop.xlane.xlu0 %344
        %v346 = vmul.f32 %v345, 0.00390625
        %v347 = vld [vmem:[%s3] sm:$0xff]
        %v348 = vld [vmem:[%s4] sm:$0x1]
        %v350 = vlaneseq
        %v351 = vand.u32 %v350, 127
        %v352 = vlaneseq
        %v353 = vshrl.u32 %v352, 7
        %v354 = vsub.s32 %v351, %v353
        %v355 = vrot.slane %v346, %v354
        %vm356 = vcmask 64512
        %v357 = vsel %vm356, %v355, 0
        %359 = vmatprep.subr.mxu0 0.0
        %360 = vmatpush1.msra.mxu0 %v347
        %361 = vmatprep.subr.mxu0 0.0
        %362 = vmatpush1.msra.mxu0 0.0
        %363 = vmatprep.subr.mxu0 0.0
        %364 = vmatpush1.msra.mxu0 0.0
        %365 = vmatprep.subr.mxu0 0.0
        %366 = vmatpush1.msra.mxu0 0.0
        %367 = vmatprep.subr.mxu0 0.0
        %368 = vmatpush1.msra.mxu0 0.0
        %369 = vmatprep.subr.mxu0 0.0
        %370 = vmatpush1.msra.mxu0 0.0
        %371 = vmatprep.subr.mxu0 0.0
        %372 = vmatpush1.msra.mxu0 0.0
        %373 = vmatprep.subr.mxu0 0.0
        %374 = vmatpush1.msra.mxu0 0.0
        %375 = vmatprep.subr.mxu0 0.0
        %376 = vmatpush1.msra.mxu0 0.0
        %377 = vmatprep.subr.mxu0 0.0
        %378 = vmatpush1.msra.mxu0 0.0
        %379 = vmatprep.subr.mxu0 0.0
        %380 = vmatpush1.msra.mxu0 0.0
        %381 = vmatprep.subr.mxu0 0.0
        %382 = vmatpush1.msra.mxu0 0.0
        %383 = vmatprep.subr.mxu0 0.0
        %384 = vmatpush1.msra.mxu0 0.0
        %385 = vmatprep.subr.mxu0 0.0
        %386 = vmatpush1.msra.mxu0 0.0
        %387 = vmatprep.subr.mxu0 0.0
        %388 = vmatpush1.msra.mxu0 0.0
        %389 = vmatprep.subr.mxu0 0.0
        %390 = vmatpush1.msra.mxu0 0.0
        %391 = vmatprep.subr.mxu0 0.0
        %392 = vmatpush1.msra.mxu0 0.0
        %393 = vmatprep.subr.mxu0 0.0
        %394 = vmatpush1.msra.mxu0 0.0
        %395 = vmatprep.subr.mxu0 0.0
        %396 = vmatpush1.msra.mxu0 0.0
        %397 = vmatprep.subr.mxu0 0.0
        %398 = vmatpush1.msra.mxu0 0.0
        %399 = vmatprep.subr.mxu0 0.0
        %400 = vmatpush1.msra.mxu0 0.0
        %401 = vmatprep.subr.mxu0 0.0
        %402 = vmatpush1.msra.mxu0 0.0
        %403 = vmatprep.subr.mxu0 0.0
        %404 = vmatpush1.msra.mxu0 0.0
        %405 = vmatprep.subr.mxu0 0.0
        %406 = vmatpush1.msra.mxu0 0.0
        %407 = vmatprep.subr.mxu0 0.0
        %408 = vmatpush1.msra.mxu0 0.0
        %409 = vmatprep.subr.mxu0 0.0
        %410 = vmatpush1.msra.mxu0 0.0
        %411 = vmatprep.subr.mxu0 0.0
        %412 = vmatpush1.msra.mxu0 0.0
        %413 = vmatprep.subr.mxu0 0.0
        %414 = vmatpush1.msra.mxu0 0.0
        %415 = vmatprep.subr.mxu0 0.0
        %416 = vmatpush1.msra.mxu0 0.0
        %417 = vmatprep.subr.mxu0 0.0
        %418 = vmatpush1.msra.mxu0 0.0
        %419 = vmatprep.subr.mxu0 0.0
        %420 = vmatpush1.msra.mxu0 0.0
        %421 = vmatprep.subr.mxu0 0.0
        %422 = vmatpush1.msra.mxu0 0.0
        %423 = vmatprep.mubr.f32.mxu0 0.0
        %424 = vmatmul.mubr.f32.gmra.mrb[0].mxu0 %v357
        %v425 = vpop.f32.mrb[0].mxu0
        %v426 = vadd.f32 %v348, %v425
        %v427 = vpop.f32.mrb[0].mxu0
        %428 = vdwg.mxu0
        %v429 = vmax.f32 %v426, 0.0
        %v430 = vld [vmem:[%s5] sm:$0xf]
        %v431 = vld [vmem:[%s6] sm:$0x1]
        %vm432 = vcmask 31744
        %v434 = vsel %vm432, %v429, 0
        %vm436 = vcmask 1043456
        %v438 = vsel %vm436, %v430, 0
        %440 = vmatprep.subr.mxu0 0.0
        %441 = vmatpush1.msra.mxu0 %v438
        %442 = vmatprep.subr.mxu0 0.0
        %443 = vmatpush1.msra.mxu0 0.0
        %444 = vmatprep.subr.mxu0 0.0
        %445 = vmatpush1.msra.mxu0 0.0
        %446 = vmatprep.subr.mxu0 0.0
        %447 = vmatpush1.msra.mxu0 0.0
        %448 = vmatprep.subr.mxu0 0.0
        %449 = vmatpush1.msra.mxu0 0.0
        %450 = vmatprep.subr.mxu0 0.0
        %451 = vmatpush1.msra.mxu0 0.0
        %452 = vmatprep.subr.mxu0 0.0
        %453 = vmatpush1.msra.mxu0 0.0
        %454 = vmatprep.subr.mxu0 0.0
        %455 = vmatpush1.msra.mxu0 0.0
        %456 = vmatprep.subr.mxu0 0.0
        %457 = vmatpush1.msra.mxu0 0.0
        %458 = vmatprep.subr.mxu0 0.0
        %459 = vmatpush1.msra.mxu0 0.0
        %460 = vmatprep.subr.mxu0 0.0
        %461 = vmatpush1.msra.mxu0 0.0
        %462 = vmatprep.subr.mxu0 0.0
        %463 = vmatpush1.msra.mxu0 0.0
        %464 = vmatprep.subr.mxu0 0.0
        %465 = vmatpush1.msra.mxu0 0.0
        %466 = vmatprep.subr.mxu0 0.0
        %467 = vmatpush1.msra.mxu0 0.0
        %468 = vmatprep.subr.mxu0 0.0
        %469 = vmatpush1.msra.mxu0 0.0
        %470 = vmatprep.subr.mxu0 0.0
        %471 = vmatpush1.msra.mxu0 0.0
        %472 = vmatprep.subr.mxu0 0.0
        %473 = vmatpush1.msra.mxu0 0.0
        %474 = vmatprep.subr.mxu0 0.0
        %475 = vmatpush1.msra.mxu0 0.0
        %476 = vmatprep.subr.mxu0 0.0
        %477 = vmatpush1.msra.mxu0 0.0
        %478 = vmatprep.subr.mxu0 0.0
        %479 = vmatpush1.msra.mxu0 0.0
        %480 = vmatprep.subr.mxu0 0.0
        %481 = vmatpush1.msra.mxu0 0.0
        %482 = vmatprep.subr.mxu0 0.0
        %483 = vmatpush1.msra.mxu0 0.0
        %484 = vmatprep.subr.mxu0 0.0
        %485 = vmatpush1.msra.mxu0 0.0
        %486 = vmatprep.subr.mxu0 0.0
        %487 = vmatpush1.msra.mxu0 0.0
        %488 = vmatprep.subr.mxu0 0.0
        %489 = vmatpush1.msra.mxu0 0.0
        %490 = vmatprep.subr.mxu0 0.0
        %491 = vmatpush1.msra.mxu0 0.0
        %492 = vmatprep.subr.mxu0 0.0
        %493 = vmatpush1.msra.mxu0 0.0
        %494 = vmatprep.subr.mxu0 0.0
        %495 = vmatpush1.msra.mxu0 0.0
        %496 = vmatprep.subr.mxu0 0.0
        %497 = vmatpush1.msra.mxu0 0.0
        %498 = vmatprep.subr.mxu0 0.0
        %499 = vmatpush1.msra.mxu0 0.0
        %500 = vmatprep.subr.mxu0 0.0
        %501 = vmatpush1.msra.mxu0 0.0
        %502 = vmatprep.subr.mxu0 0.0
        %503 = vmatpush1.msra.mxu0 0.0
        %504 = vmatprep.mubr.f32.mxu0 0.0
        %505 = vmatmul.mubr.f32.gmra.mrb[0].mxu0 %v434
        %v506 = vpop.f32.mrb[0].mxu0
        %v507 = vadd.f32 %v431, %v506
        %v508 = vpop.f32.mrb[0].mxu0
        %509 = vdwg.mxu0
        %v510 = vxor.u32 %v507, 2147483648
        %v511 = vmul.f32 %v510, 1.442695
        %v512 = vpow.pop %v511
        %v513 = vadd.f32 %v512, 1.0
        %v514 = vrcp.pop %v513
        %v515 = vmul.f32 1.0, %v514
        %v516 = vlaneseq
        %v517 = vshrl.u32 %v516, 7
        %v518 = vsub.s32 0, %v517
        %v519 = vrot.slane %v515, %v518
        %521 = vbcast.lane.b32.xlu0 %v519, 256
        %v522 = vpop.permute.xlu0 %521
        %v523 = vadd.f32 %v340, %v522
        %v524 = vadd.f32 %v342, %v522
        %v525 = vmul.f32 %v523, %v297
        %v526 = vmul.f32 %v524, %v298
        %527 = vst [vmem:[%s296] sm:$0xff] %v525
        %528 = vst [vmem:[%s296 + $0x8] sm:$0xff] %v526
        %s529 = sand.u32 %s186, 1
        %s530 = scalar_lea.sflag [#allocation5], %s529
        %s531 = sand.u32 %s186, 1
        %s532 = smul.addr %s531, 16
        %s533 = scalar_lea.vmem [#allocation6], %s532
        // Predicated region
        $region53: #{tpu_custom_call.1} parent=47 // pred_check
          %p534 = pneg %p196
        $region54: #{tpu_custom_call.1} parent=47 // pred_check_branch
          %536 = sbr.rel (%p534) target = $region56
        $region55: #{tpu_custom_call.1} parent=47 // pred_region
          %s538 = ssub.s32 256, 256
          %539 = vsyncadd %s530, %s538
          %s540 = smul.addr %s26, 2
          %s541 = smul.addr %s540, 128
          %s542 = scalar_lea.hbm %s7, %s541
          %s544 = sshll.u32 %s533, 4
          %s545 = int_to_ptr.vmem [resolvable:$true] %s544
          %547 = dma.vmem_to_hbm [thread:$0]  %s545, 256, %s542, %s530
        $region56: #{tpu_custom_call.1} parent=47 // pred_fallthru
          _
      $region48: #{tpu_custom_call.1} parent=5 // pred_fallthru
        _
      %p548 = scmp.le.s32.totalorder 2, %s21
      // Predicated region
      $region57: #{tpu_custom_call.1} parent=5 // pred_check
        %p549 = pneg %p548
      $region58: #{tpu_custom_call.1} parent=5 // pred_check_branch
        %551 = sbr.rel (%p549) target = $region60
      $region59: #{tpu_custom_call.1} parent=5 // pred_region
        %s552 = ssub.s32 %s21, 2
        // Predicated region
        $region61: #{tpu_custom_call.1} parent=59 // pred_check
          %p553 = pneg %p202
        $region62: #{tpu_custom_call.1} parent=59 // pred_check_branch
          %555 = sbr.rel (%p553) target = $region64
        $region63: #{tpu_custom_call.1} parent=59 // pred_region
          %s556 = sand.u32 %s187, 1
          %s557 = scalar_lea.sflag [#allocation5], %s556
          %s558 = sand.u32 %s187, 1
          %s559 = smul.addr %s558, 16
          %s560 = scalar_lea.vmem [#allocation6], %s559
          %561 = dma.done %s557, 256
        $region64: #{tpu_custom_call.1} parent=59 // pred_fallthru
          _
      $region60: #{tpu_custom_call.1} parent=5 // pred_fallthru
        _
    $region6: #{tpu_custom_call.1} parent=1 // loop_footer
      %s25 = sadd.s32 1, %s21
    $region7: #{tpu_custom_call.1} parent=1 // loop_footer_branch
      %20 = sbr.rel target = $region3
    $region8: #{tpu_custom_call.1} parent=1 // loop_exit
      _
    %562 = vsyncpa [#allocation4], 1
    %s563 = scalar_lea.sflag [#allocation4], 1
    %564 = vsyncpa %s563, 1
    %565 = vsyncpa [#allocation5], 1
    %s566 = scalar_lea.sflag [#allocation5], 1
    %567 = vsyncpa %s566, 1

</llo_original>
